<compile_context>
chip_gen: v7x
topology: tpu7x:2x2x1
jax: 0.10.0
libtpu: 0.0.40
codegen_flags: <defaults>
</compile_context>

<pallas_src>
import jax
import jax.numpy as jnp
from jax.experimental import pallas as pl
from jax.experimental.pallas import tpu as pltpu

# Problem sizes (df_data_info_r is a CSV in the original module; deterministic values chosen here).
NUM_FEATURE = 32
HIDDEN1 = 256
HIDDEN2 = 112            # logical (PyTorch) width
HIDDEN2_PAD = 128        # lane-dense padded width (zero padding is numerically exact)
CLASS_AMOUNT = 8         # logical output width
OUT_PAD = 128            # lane-dense padded output width
BATCH = 8                # rows per independent logical batch (BN statistics window)
BN_EPS = 1e-5

# static offsets into the packed bias vector (all 128-lane aligned)
_B1_OFF = 0
_B2_OFF = HIDDEN1                       # 256
_B3_OFF = HIDDEN1 + HIDDEN2_PAD         # 384
BIAS_TOTAL = HIDDEN1 + HIDDEN2_PAD + OUT_PAD   # 512


def _mlp_kernel(x_ref, w1_ref, w2_ref, w3_ref, bias_ref, o_ref):
    # unpack biases (single consolidated f32 input; static, lane-aligned slices)
    b1 = bias_ref[:, _B1_OFF:_B1_OFF + HIDDEN1]
    b2 = bias_ref[:, _B2_OFF:_B2_OFF + HIDDEN2_PAD]   # BN beta already folded in
    b3 = bias_ref[:, _B3_OFF:_B3_OFF + OUT_PAD]

    # x arrives f32; cast to bf16 in-kernel (VPU cast of an (8,32) tile rides in bundle slack)
    x = x_ref[0].astype(jnp.bfloat16)                 # (B, F)

    # linear1 (bf16 MXU, f32 accumulate) + bias + ReLU (f32 VPU)
    h1 = jnp.dot(x, w1_ref[...], preferred_element_type=jnp.float32) + b1
    h1 = jnp.maximum(h1, 0.0)

    # BatchNorm1d, training-mode statistics over this grid step's logical batch.
    # Two-pass variance (numerically safe); gamma/beta are folded into W2/b2.
    mean = jnp.mean(h1, axis=0, keepdims=True)
    centered = h1 - mean
    var = jnp.mean(centered * centered, axis=0, keepdims=True)
    h1 = centered * jax.lax.rsqrt(var + BN_EPS)       # f32 normalization only

    # linear2 (BN affine folded into W2/b2) + ReLU
    h2 = jnp.dot(h1.astype(jnp.bfloat16), w2_ref[...],
                 preferred_element_type=jnp.float32) + b2
    h2 = jnp.maximum(h2, 0.0)

    # linear3 -> lane-dense (B, 128) output tile
    o_ref[0] = jnp.dot(h2.astype(jnp.bfloat16), w3_ref[...],
                       preferred_element_type=jnp.float32) + b3


def simple_model_forward(x_batches, packed_params):
    """x_batches: (num_batches, B, NUM_FEATURE) f32 — num_batches independent logical batches,
    each normalized with its own BN statistics (matching per-batch PyTorch semantics).
    A plain (B, NUM_FEATURE) input is treated as a single batch.
    Returns (num_batches, B, CLASS_AMOUNT) (or (B, CLASS_AMOUNT) for 2-D input), f32."""
    w1, w2, w3, biases = packed_params

    squeeze = False
    if x_batches.ndim == 2:
        x_batches = x_batches[None]
        squeeze = True
    n, b, f = x_batches.shape

    flops = 2 * n * b * (NUM_FEATURE * HIDDEN1
                         + HIDDEN1 * HIDDEN2_PAD
                         + HIDDEN2_PAD * OUT_PAD)
    bytes_accessed = (x_batches.size * 4
                      + w1.size * 2 + w2.size * 2 + w3.size * 2
                      + biases.size * 4
                      + n * b * OUT_PAD * 4)

    out = pl.pallas_call(
        _mlp_kernel,
        out_shape=jax.ShapeDtypeStruct((n, b, OUT_PAD), jnp.float32),
        grid=(n,),
        in_specs=[
            # per-step batch tile
            pl.BlockSpec((1, b, f), lambda i: (i, 0, 0)),
            # weights / biases: constant block index -> stay resident in VMEM across the grid
            pl.BlockSpec((NUM_FEATURE, HIDDEN1), lambda i: (0, 0)),
            pl.BlockSpec((HIDDEN1, HIDDEN2_PAD), lambda i: (0, 0)),
            pl.BlockSpec((HIDDEN2_PAD, OUT_PAD), lambda i: (0, 0)),
            pl.BlockSpec((1, BIAS_TOTAL), lambda i: (0, 0)),
        ],
        out_specs=pl.BlockSpec((1, b, OUT_PAD), lambda i: (i, 0, 0)),
        cost_estimate=pl.CostEstimate(flops=flops, transcendentals=0,
                                      bytes_accessed=bytes_accessed),
        compiler_params=pltpu.CompilerParams(
            dimension_semantics=("parallel",),      # shards batches across v7x's 2 TCs
            vmem_limit_bytes=4 << 20),
    )(x_batches, w1, w2, w3, biases)

    out = out[:, :, :CLASS_AMOUNT]                  # drop lane padding
    if squeeze:
        out = out[0]
    return out


def init_params(key):
    """Raw (PyTorch-layout-equivalent) f32 parameters."""
    ks = jax.random.split(key, 6)
    w1 = jax.random.normal(ks[0], (NUM_FEATURE, HIDDEN1), jnp.float32) * 0.05
    b1 = jax.random.normal(ks[1], (1, HIDDEN1), jnp.float32) * 0.01
    gamma = jnp.ones((HIDDEN1,), jnp.float32)
    beta = jnp.zeros((HIDDEN1,), jnp.float32)
    w2 = jax.random.normal(ks[2], (HIDDEN1, HIDDEN2), jnp.float32) * 0.05
    b2 = jax.random.normal(ks[3], (1, HIDDEN2), jnp.float32) * 0.01
    w3 = jax.random.normal(ks[4], (HIDDEN2, CLASS_AMOUNT), jnp.float32) * 0.05
    b3 = jax.random.normal(ks[5], (1, CLASS_AMOUNT), jnp.float32) * 0.01
    return (w1, b1, gamma, beta, w2, b2, w3, b3)


def prepare_params(raw):
    """Host-side param prep: fold BN affine into linear2, pad HIDDEN2 -> 128 and CLASS_AMOUNT -> 128,
    cast matmul weights to bf16, pack all biases into one lane-aligned f32 vector."""
    w1, b1, gamma, beta, w2, b2, w3, b3 = raw
    # (gamma*xhat + beta) @ W2 + b2  ==  xhat @ (gamma[:,None]*W2) + (beta @ W2 + b2)
    w2_folded = gamma[:, None] * w2
    b2_folded = beta[None, :] @ w2 + b2
    # zero-pad HIDDEN2 -> HIDDEN2_PAD and CLASS_AMOUNT -> OUT_PAD (exact: padded activations are
    # relu(0)=0 and padded W3 rows/cols are 0, so logical outputs are untouched)
    pad_h = HIDDEN2_PAD - HIDDEN2
    pad_o = OUT_PAD - CLASS_AMOUNT
    w2_p = jnp.pad(w2_folded, ((0, 0), (0, pad_h)))
    b2_p = jnp.pad(b2_folded, ((0, 0), (0, pad_h)))
    w3_p = jnp.pad(w3, ((0, pad_h), (0, pad_o)))
    b3_p = jnp.pad(b3, ((0, 0), (0, pad_o)))
    biases = jnp.concatenate([b1, b2_p, b3_p], axis=1)     # (1, BIAS_TOTAL) f32
    return (w1.astype(jnp.bfloat16),
            w2_p.astype(jnp.bfloat16),
            w3_p.astype(jnp.bfloat16),
            biases)


def _reference_one_batch(x, raw):
    """Pure-JAX f32 reference with original (unfolded, unpadded) semantics for one logical batch."""
    w1, b1, gamma, beta, w2, b2, w3, b3 = raw
    h1 = jnp.maximum(x @ w1 + b1, 0.0)
    mean = jnp.mean(h1, axis=0, keepdims=True)
    var = jnp.mean((h1 - mean) ** 2, axis=0, keepdims=True)
    h1 = (h1 - mean) * jax.lax.rsqrt(var + BN_EPS) * gamma[None, :] + beta[None, :]
    h2 = jnp.maximum(h1 @ w2 + b2, 0.0)
    return h2 @ w3 + b3


if __name__ == "__main__":
    key = jax.random.PRNGKey(0)
    pkey, xkey = jax.random.split(key)
    raw_params = init_params(pkey)
    packed = prepare_params(raw_params)

    NUM_BATCHES = 4
    x = jax.random.normal(xkey, (NUM_BATCHES, BATCH, NUM_FEATURE), jnp.float32)

    out = simple_model_forward(x, packed)
    jax.block_until_ready(out)
    assert out.shape == (NUM_BATCHES, BATCH, CLASS_AMOUNT)

    # correctness vs f32 reference (per independent logical batch; bf16 matmul operands
    # -> generous tolerance)
    ref = jnp.stack([_reference_one_batch(x[i], raw_params) for i in range(NUM_BATCHES)])
    assert jnp.max(jnp.abs(out - ref)) < 5e-2

    # 2-D single-batch path
    out1 = simple_model_forward(x[0], packed)
    jax.block_until_ready(out1)
    assert out1.shape == (BATCH, CLASS_AMOUNT)
    assert jnp.max(jnp.abs(out1 - ref[0])) < 5e-2

    print("KERNEL_OK")
</pallas_src>

<mosaic_0001>
module attributes {stable_mosaic.version = 11 : i64} {
  func.func @_mlp_kernel(%arg0: i32, %arg1: memref<1x8x32xf32, #tpu.memory_space<vmem>>, %arg2: memref<32x256xbf16, #tpu.memory_space<vmem>>, %arg3: memref<256x128xbf16, #tpu.memory_space<vmem>>, %arg4: memref<128x128xbf16, #tpu.memory_space<vmem>>, %arg5: memref<1x512xf32, #tpu.memory_space<vmem>>, %arg6: memref<1x8x128xf32, #tpu.memory_space<vmem>>) attributes {dimension_semantics = [#tpu.dimension_semantics<parallel>], iteration_bounds = array<i64: 4>, scalar_prefetch = 0 : i64, scratch_operands = 0 : i64, tpu.core_type = #tpu.core_type<tc>, window_params = [{transform_indices = @transform_0, window_bounds = array<i64: 1, 8, 32>}, {pipeline_mode = #tpu.pipeline_mode<synchronous>, transform_indices = @transform_1, window_bounds = array<i64: 32, 256>}, {pipeline_mode = #tpu.pipeline_mode<synchronous>, transform_indices = @transform_2, window_bounds = array<i64: 256, 128>}, {pipeline_mode = #tpu.pipeline_mode<synchronous>, transform_indices = @transform_3, window_bounds = array<i64: 128, 128>}, {pipeline_mode = #tpu.pipeline_mode<synchronous>, transform_indices = @transform_4, window_bounds = array<i64: 1, 512>}, {transform_indices = @transform_5, window_bounds = array<i64: 1, 8, 128>}]} {
    %c0 = arith.constant 0 : index
    %c0_0 = arith.constant 0 : index
    %0 = vector.load %arg5[%c0, %c0_0] : memref<1x512xf32, #tpu.memory_space<vmem>>, vector<1x256xf32>
    %c0_1 = arith.constant 0 : index
    %c256 = arith.constant 256 : index
    %1 = vector.load %arg5[%c0_1, %c256] : memref<1x512xf32, #tpu.memory_space<vmem>>, vector<1x128xf32>
    %c0_2 = arith.constant 0 : index
    %c384 = arith.constant 384 : index
    %2 = vector.load %arg5[%c0_2, %c384] : memref<1x512xf32, #tpu.memory_space<vmem>>, vector<1x128xf32>
    %c0_3 = arith.constant 0 : index
    %c0_4 = arith.constant 0 : index
    %c0_5 = arith.constant 0 : index
    %3 = vector.load %arg1[%c0_3, %c0_4, %c0_5] : memref<1x8x32xf32, #tpu.memory_space<vmem>>, vector<1x8x32xf32>
    %4 = vector.shape_cast %3 : vector<1x8x32xf32> to vector<8x32xf32>
    %5 = arith.truncf %4 : vector<8x32xf32> to vector<8x32xbf16>
    %c0_6 = arith.constant 0 : index
    %c0_7 = arith.constant 0 : index
    %6 = vector.load %arg2[%c0_6, %c0_7] : memref<32x256xbf16, #tpu.memory_space<vmem>>, vector<32x256xbf16>
    %cst = arith.constant dense<0.000000e+00> : vector<8x256xf32>
    %7 = tpu.matmul %5, %6, %cst {dimension_numbers = #tpu.dot_dimension_numbers<[1], [0], [0], [1], [0, 0, 1, 1], [], []>} : vector<8x32xbf16>, vector<32x256xbf16>, vector<8x256xf32> -> vector<8x256xf32>
    %8 = vector.broadcast %0 : vector<1x256xf32> to vector<8x256xf32>
    %9 = arith.addf %7, %8 : vector<8x256xf32>
    %cst_8 = arith.constant 0.000000e+00 : f32
    %10 = vector.broadcast %cst_8 : f32 to vector<8x256xf32>
    %11 = arith.maximumf %9, %10 : vector<8x256xf32>
    %cst_9 = arith.constant dense<0.000000e+00> : vector<256xf32>
    %12 = vector.multi_reduction <add>, %11, %cst_9 [0] : vector<8x256xf32> to vector<256xf32>
    %13 = vector.shape_cast %12 : vector<256xf32> to vector<1x256xf32>
    %cst_10 = arith.constant 8.000000e+00 : f32
    %14 = vector.broadcast %cst_10 : f32 to vector<1x256xf32>
    %15 = arith.divf %13, %14 : vector<1x256xf32>
    %16 = vector.broadcast %15 : vector<1x256xf32> to vector<8x256xf32>
    %17 = arith.subf %11, %16 : vector<8x256xf32>
    %18 = arith.mulf %17, %17 : vector<8x256xf32>
    %cst_11 = arith.constant dense<0.000000e+00> : vector<256xf32>
    %19 = vector.multi_reduction <add>, %18, %cst_11 [0] : vector<8x256xf32> to vector<256xf32>
    %20 = vector.shape_cast %19 : vector<256xf32> to vector<1x256xf32>
    %cst_12 = arith.constant 8.000000e+00 : f32
    %21 = vector.broadcast %cst_12 : f32 to vector<1x256xf32>
    %22 = arith.divf %20, %21 : vector<1x256xf32>
    %cst_13 = arith.constant 9.99999974E-6 : f32
    %23 = vector.broadcast %cst_13 : f32 to vector<1x256xf32>
    %24 = arith.addf %22, %23 : vector<1x256xf32>
    %25 = math.rsqrt %24 : vector<1x256xf32>
    %26 = vector.broadcast %25 : vector<1x256xf32> to vector<8x256xf32>
    %27 = arith.mulf %17, %26 : vector<8x256xf32>
    %28 = arith.truncf %27 : vector<8x256xf32> to vector<8x256xbf16>
    %c0_14 = arith.constant 0 : index
    %c0_15 = arith.constant 0 : index
    %29 = vector.load %arg3[%c0_14, %c0_15] : memref<256x128xbf16, #tpu.memory_space<vmem>>, vector<256x128xbf16>
    %cst_16 = arith.constant dense<0.000000e+00> : vector<8x128xf32>
    %30 = tpu.matmul %28, %29, %cst_16 {dimension_numbers = #tpu.dot_dimension_numbers<[1], [0], [0], [1], [0, 0, 1, 1], [], []>} : vector<8x256xbf16>, vector<256x128xbf16>, vector<8x128xf32> -> vector<8x128xf32>
    %31 = vector.broadcast %1 : vector<1x128xf32> to vector<8x128xf32>
    %32 = arith.addf %30, %31 : vector<8x128xf32>
    %cst_17 = arith.constant 0.000000e+00 : f32
    %33 = vector.broadcast %cst_17 : f32 to vector<8x128xf32>
    %34 = arith.maximumf %32, %33 : vector<8x128xf32>
    %35 = arith.truncf %34 : vector<8x128xf32> to vector<8x128xbf16>
    %c0_18 = arith.constant 0 : index
    %c0_19 = arith.constant 0 : index
    %36 = vector.load %arg4[%c0_18, %c0_19] : memref<128x128xbf16, #tpu.memory_space<vmem>>, vector<128x128xbf16>
    %cst_20 = arith.constant dense<0.000000e+00> : vector<8x128xf32>
    %37 = tpu.matmul %35, %36, %cst_20 {dimension_numbers = #tpu.dot_dimension_numbers<[1], [0], [0], [1], [0, 0, 1, 1], [], []>} : vector<8x128xbf16>, vector<128x128xbf16>, vector<8x128xf32> -> vector<8x128xf32>
    %38 = vector.broadcast %2 : vector<1x128xf32> to vector<8x128xf32>
    %39 = arith.addf %37, %38 : vector<8x128xf32>
    %c0_21 = arith.constant 0 : index
    %c0_22 = arith.constant 0 : index
    %c0_23 = arith.constant 0 : index
    %40 = vector.load %arg6[%c0_21, %c0_22, %c0_23] : memref<1x8x128xf32, #tpu.memory_space<vmem>>, vector<1x8x128xf32>
    %41 = vector.shape_cast %40 : vector<1x8x128xf32> to vector<8x128xf32>
    %42 = vector.shape_cast %39 : vector<8x128xf32> to vector<1x8x128xf32>
    tpu.vector_store %arg6[%c0_21, %c0_22, %c0_23], %42 {strides = array<i32>} : memref<1x8x128xf32, #tpu.memory_space<vmem>>, vector<1x8x128xf32>,
    return
  }
  func.func @transform_0(%arg0: i32) -> (i32, i32, i32) {
    %c0_i32 = arith.constant 0 : i32
    %c0_i32_0 = arith.constant 0 : i32
    %c0_i32_1 = arith.constant 0 : i32
    return %arg0, %c0_i32, %c0_i32_0 : i32, i32, i32
  }
  func.func @transform_1(%arg0: i32) -> (i32, i32) {
    %c0_i32 = arith.constant 0 : i32
    %c0_i32_0 = arith.constant 0 : i32
    %c0_i32_1 = arith.constant 0 : i32
    return %c0_i32, %c0_i32_0 : i32, i32
  }
  func.func @transform_2(%arg0: i32) -> (i32, i32) {
    %c0_i32 = arith.constant 0 : i32
    %c0_i32_0 = arith.constant 0 : i32
    %c0_i32_1 = arith.constant 0 : i32
    return %c0_i32, %c0_i32_0 : i32, i32
  }
  func.func @transform_3(%arg0: i32) -> (i32, i32) {
    %c0_i32 = arith.constant 0 : i32
    %c0_i32_0 = arith.constant 0 : i32
    %c0_i32_1 = arith.constant 0 : i32
    return %c0_i32, %c0_i32_0 : i32, i32
  }
  func.func @transform_4(%arg0: i32) -> (i32, i32) {
    %c0_i32 = arith.constant 0 : i32
    %c0_i32_0 = arith.constant 0 : i32
    %c0_i32_1 = arith.constant 0 : i32
    return %c0_i32, %c0_i32_0 : i32, i32
  }
  func.func @transform_5(%arg0: i32) -> (i32, i32, i32) {
    %c0_i32 = arith.constant 0 : i32
    %c0_i32_0 = arith.constant 0 : i32
    %c0_i32_1 = arith.constant 0 : i32
    return %arg0, %c0_i32, %c0_i32_0 : i32, i32, i32
  }
}

</mosaic_0001>

<llo_original>
// kernel: tpu_custom_call.1
$region0: #{tpu_custom_call.1}
  #allocation0 [shape = 'u32[]', space=smem, size = 0x4, offset = 0x4, fixed_abs, tag = 'smem constant byte address 0x4 - core index']
  #allocation1 [shape = 'u32[144,128]{1,0:T(1,128)}', space=vmem, size = 0x12000, scoped, tag = 'internal scratch']
  %s0 = inlined_call_operand.hbm [shape: f32[4,8,32], index: 0, kind: input, shape index: {}]
  %s1 = inlined_call_operand.hbm [shape: bf16[32,256], index: 1, kind: input, shape index: {}]
  %s2 = inlined_call_operand.hbm [shape: bf16[256,128], index: 2, kind: input, shape index: {}]
  %s3 = inlined_call_operand.hbm [shape: bf16[128,128], index: 3, kind: input, shape index: {}]
  %s4 = inlined_call_operand.vmem [shape: f32[1,512], index: 4, kind: input, shape index: {}]
  %s5 = inlined_call_operand.hbm [shape: f32[4,8,128], index: 5, kind: output, shape index: {}]
  %s6 = sld [smem:[#allocation0]]
  $region69: #{tpu_custom_call.1} parent=0
    _
  %s8 = ssub.s32 1, %s6
  %s9 = scalar_select 0, %s8, %s6
  $region1: #{tpu_custom_call.1} parent=0
    #allocation2 [shape = 'u8[8192]{0}', space=vmem, size = 0x2000, scoped, tag = 'input window, operand 0']
    #allocation3 [shape = 's32[2]{0}', space=sflag, size = 0x8, scoped, tag = 'scoped memory for tpu_custom_call.1']
    #allocation4 [shape = 's32[2]{0}', space=sflag, size = 0x8, scoped, tag = 'scoped memory for tpu_custom_call.1']
    #allocation5 [shape = 'u8[16384]{0}', space=vmem, size = 0x4000, scoped, tag = 'input window, operand 1, single buffered']
    #allocation6 [shape = 's32[1]{0}', space=sflag, size = 0x4, scoped, tag = 'scoped memory for tpu_custom_call.1']
    #allocation7 [shape = 'u8[65536]{0}', space=vmem, size = 0x10000, scoped, tag = 'input window, operand 2, single buffered']
    #allocation8 [shape = 'u8[32768]{0}', space=vmem, size = 0x8000, scoped, tag = 'input window, operand 3, single buffered']
    #allocation9 [shape = 's32[1]{0}', space=sflag, size = 0x4, scoped, tag = 'scoped memory for tpu_custom_call.1']
    #allocation10 [shape = 'u8[8192]{0}', space=vmem, size = 0x2000, scoped, tag = 'output window, operand 0']
    %10 = vsyncpa [#allocation3], 0
    %s11 = scalar_lea.sflag [#allocation3], 1
    %12 = vsyncpa %s11, 0
    %13 = vsyncpa [#allocation6], 0
    %14 = vsyncpa [#allocation9], 0
    %15 = vsyncpa [#allocation4], 0
    %s16 = scalar_lea.sflag [#allocation4], 1
    %17 = vsyncpa %s16, 0
    loop: start=0, step=1, limit=6
    $region2: #{tpu_custom_call.1} parent=1 // loop_pre_header
      _
    $region3: #{tpu_custom_call.1} parent=1 // loop_header
      %s19 = sphi 0, %s23
      %p20 = scmp.ge.s32.totalorder %s19, 6
      %s29 = sphi 0, %s31
      %s32 = sphi 0, %s29
      %s33 = sphi 0, %s32
      %s49 = sphi 0, %s33
      %s53 = sphi 0, %s53
      %s55 = sphi 0, %s53
      %s56 = sphi 0, %s55
      %s70 = sphi 0, %s56
      %s74 = sphi 0, %s74
      %s76 = sphi 0, %s74
      %s77 = sphi 0, %s76
      %s91 = sphi 0, %s77
      %s95 = sphi 0, %s95
      %s97 = sphi 0, %s95
      %s98 = sphi 0, %s97
      %s112 = sphi 0, %s98
      %s116 = sphi 0, %s116
      %s118 = sphi 0, %s116
      %s119 = sphi 0, %s118
      %s133 = sphi 0, %s119
      %s139 = sphi 0, %s141
      %s142 = sphi 0, %s139
      %s143 = sphi 0, %s142
      %s159 = sphi 0, %s143
    $region4: #{tpu_custom_call.1} parent=1 // loop_header_branch
      %22 = sbr.rel (%p20) target = $region8
    $region5: #{tpu_custom_call.1} parent=1 // loop_body
      %s24 = ssub.s32 %s19, 1
      %s25 = ssub.s32 %s19, 2
      %s26 = sadd.s32 %s19, 1
      %s27 = ssub.s32 %s19, %s26
      %p28 = scmp.eq.s32.totalorder %s27, 0
      %s30 = sadd.s32 %s29, 1
      %s31 = scalar_select %p28, %s29, %s30
      %p34 = pneg %p28
      %p35 = scmp.eq.s32.totalorder %s19, 3
      %p36 = por %p34, %p35
      %p37 = scmp.ne.s32.totalorder %s29, %s32
      %p38 = scmp.eq.s32.totalorder %s19, 0
      %p39 = por %p37, %p38
      %p40 = scmp.ne.s32.totalorder %s29, %s32
      %p41 = scmp.eq.s32.totalorder %s24, 3
      %p42 = por %p40, %p41
      %p43 = scmp.ne.s32.totalorder %s32, %s33
      %p44 = scmp.eq.s32.totalorder %s24, 0
      %p45 = por %p43, %p44
      %p46 = scmp.ne.s32.totalorder %s32, %s33
      %p47 = scmp.eq.s32.totalorder %s25, 3
      %p48 = por %p46, %p47
      %p50 = scmp.ne.s32.totalorder %s33, %s49
      %p51 = scmp.eq.s32.totalorder %s25, 0
      %p52 = por %p50, %p51
      %s54 = sadd.s32 %s53, 1
      %p57 = scmp.eq.s32.totalorder %s19, 3
      %p58 = scmp.ne.s32.totalorder %s53, %s55
      %p59 = scmp.eq.s32.totalorder %s19, 0
      %p60 = por %p58, %p59
      %p61 = scmp.ne.s32.totalorder %s53, %s55
      %p62 = scmp.eq.s32.totalorder %s24, 3
      %p63 = por %p61, %p62
      %p64 = scmp.ne.s32.totalorder %s55, %s56
      %p65 = scmp.eq.s32.totalorder %s24, 0
      %p66 = por %p64, %p65
      %p67 = scmp.ne.s32.totalorder %s55, %s56
      %p68 = scmp.eq.s32.totalorder %s25, 3
      %p69 = por %p67, %p68
      %p71 = scmp.ne.s32.totalorder %s56, %s70
      %p72 = scmp.eq.s32.totalorder %s25, 0
      %p73 = por %p71, %p72
      %s75 = sadd.s32 %s74, 1
      %p78 = scmp.eq.s32.totalorder %s19, 3
      %p79 = scmp.ne.s32.totalorder %s74, %s76
      %p80 = scmp.eq.s32.totalorder %s19, 0
      %p81 = por %p79, %p80
      %p82 = scmp.ne.s32.totalorder %s74, %s76
      %p83 = scmp.eq.s32.totalorder %s24, 3
      %p84 = por %p82, %p83
      %p85 = scmp.ne.s32.totalorder %s76, %s77
      %p86 = scmp.eq.s32.totalorder %s24, 0
      %p87 = por %p85, %p86
      %p88 = scmp.ne.s32.totalorder %s76, %s77
      %p89 = scmp.eq.s32.totalorder %s25, 3
      %p90 = por %p88, %p89
      %p92 = scmp.ne.s32.totalorder %s77, %s91
      %p93 = scmp.eq.s32.totalorder %s25, 0
      %p94 = por %p92, %p93
      %s96 = sadd.s32 %s95, 1
      %p99 = scmp.eq.s32.totalorder %s19, 3
      %p100 = scmp.ne.s32.totalorder %s95, %s97
      %p101 = scmp.eq.s32.totalorder %s19, 0
      %p102 = por %p100, %p101
      %p103 = scmp.ne.s32.totalorder %s95, %s97
      %p104 = scmp.eq.s32.totalorder %s24, 3
      %p105 = por %p103, %p104
      %p106 = scmp.ne.s32.totalorder %s97, %s98
      %p107 = scmp.eq.s32.totalorder %s24, 0
      %p108 = por %p106, %p107
      %p109 = scmp.ne.s32.totalorder %s97, %s98
      %p110 = scmp.eq.s32.totalorder %s25, 3
      %p111 = por %p109, %p110
      %p113 = scmp.ne.s32.totalorder %s98, %s112
      %p114 = scmp.eq.s32.totalorder %s25, 0
      %p115 = por %p113, %p114
      %s117 = sadd.s32 %s116, 1
      %p120 = scmp.eq.s32.totalorder %s19, 3
      %p121 = scmp.ne.s32.totalorder %s116, %s118
      %p122 = scmp.eq.s32.totalorder %s19, 0
      %p123 = por %p121, %p122
      %p124 = scmp.ne.s32.totalorder %s116, %s118
      %p125 = scmp.eq.s32.totalorder %s24, 3
      %p126 = por %p124, %p125
      %p127 = scmp.ne.s32.totalorder %s118, %s119
      %p128 = scmp.eq.s32.totalorder %s24, 0
      %p129 = por %p127, %p128
      %p130 = scmp.ne.s32.totalorder %s118, %s119
      %p131 = scmp.eq.s32.totalorder %s25, 3
      %p132 = por %p130, %p131
      %p134 = scmp.ne.s32.totalorder %s119, %s133
      %p135 = scmp.eq.s32.totalorder %s25, 0
      %p136 = por %p134, %p135
      %s137 = ssub.s32 %s19, %s26
      %p138 = scmp.eq.s32.totalorder %s137, 0
      %s140 = sadd.s32 %s139, 1
      %s141 = scalar_select %p138, %s139, %s140
      %p144 = pneg %p138
      %p145 = scmp.eq.s32.totalorder %s19, 3
      %p146 = por %p144, %p145
      %p147 = scmp.ne.s32.totalorder %s139, %s142
      %p148 = scmp.eq.s32.totalorder %s19, 0
      %p149 = por %p147, %p148
      %p150 = scmp.ne.s32.totalorder %s139, %s142
      %p151 = scmp.eq.s32.totalorder %s24, 3
      %p152 = por %p150, %p151
      %p153 = scmp.ne.s32.totalorder %s142, %s143
      %p154 = scmp.eq.s32.totalorder %s24, 0
      %p155 = por %p153, %p154
      %p156 = scmp.ne.s32.totalorder %s142, %s143
      %p157 = scmp.eq.s32.totalorder %s25, 3
      %p158 = por %p156, %p157
      %p160 = scmp.ne.s32.totalorder %s143, %s159
      %p161 = scmp.eq.s32.totalorder %s25, 0
      %p162 = por %p160, %p161
      %p163 = scmp.le.s32.totalorder 1, %s19
      %p164 = scmp.lt.s32.totalorder %s19, 5
      %p165 = pnand %p163, %p164
      %p166 = pneg %p165
      // Predicated region
      $region9: #{tpu_custom_call.1} parent=5 // pred_check
        _
      $region10: #{tpu_custom_call.1} parent=5 // pred_check_branch
        %168 = sbr.rel (%p165) target = $region12
      $region11: #{tpu_custom_call.1} parent=5 // pred_region
        %s169 = ssub.s32 %s19, 1
        // Predicated region
        $region13: #{tpu_custom_call.1} parent=11 // pred_check
          %p170 = pneg %p66
        $region14: #{tpu_custom_call.1} parent=11 // pred_check_branch
          %172 = sbr.rel (%p170) target = $region16
        $region15: #{tpu_custom_call.1} parent=11 // pred_region
          %s174 = ssub.s32 512, 512
          %175 = vsyncadd [#allocation6], %s174
          %s176 = sshll.u32 [#allocation5], 4
          %s177 = int_to_ptr.vmem [resolvable:$true] %s176
          %182 = dma.hbm_to_vmem [thread:$0]  %s1, 512, %s177, [#allocation6], 128, 128, 8
        $region16: #{tpu_custom_call.1} parent=11 // pred_fallthru
          _
        // Predicated region
        $region17: #{tpu_custom_call.1} parent=11 // pred_check
          %p183 = pneg %p87
        $region18: #{tpu_custom_call.1} parent=11 // pred_check_branch
          %185 = sbr.rel (%p183) target = $region20
        $region19: #{tpu_custom_call.1} parent=11 // pred_region
          %s187 = ssub.s32 2048, 2048
          %188 = vsyncadd [#allocation6], %s187
          %s189 = sshll.u32 [#allocation7], 4
          %s190 = int_to_ptr.vmem [resolvable:$true] %s189
          %195 = dma.hbm_to_vmem [thread:$0]  %s2, 2048, %s190, [#allocation6], 64, 64, 4
        $region20: #{tpu_custom_call.1} parent=11 // pred_fallthru
          _
        // Predicated region
        $region21: #{tpu_custom_call.1} parent=11 // pred_check
          %p196 = pneg %p108
        $region22: #{tpu_custom_call.1} parent=11 // pred_check_branch
          %198 = sbr.rel (%p196) target = $region24
        $region23: #{tpu_custom_call.1} parent=11 // pred_region
          %s200 = ssub.s32 1024, 1024
          %201 = vsyncadd [#allocation9], %s200
          %s202 = sshll.u32 [#allocation8], 4
          %s203 = int_to_ptr.vmem [resolvable:$true] %s202
          %208 = dma.hbm_to_vmem [thread:$0]  %s3, 1024, %s203, [#allocation9], 64, 64, 4
        $region24: #{tpu_custom_call.1} parent=11 // pred_fallthru
          _
        // Predicated region
        $region25: #{tpu_custom_call.1} parent=11 // pred_check
          %p209 = pneg %p129
        $region26: #{tpu_custom_call.1} parent=11 // pred_check_branch
          %211 = sbr.rel (%p209) target = $region28
        $region27: #{tpu_custom_call.1} parent=11 // pred_region
          _
        $region28: #{tpu_custom_call.1} parent=11 // pred_fallthru
          _
      $region12: #{tpu_custom_call.1} parent=5 // pred_fallthru
        _
      %p212 = scmp.lt.s32.totalorder %s19, 4
      // Predicated region
      $region29: #{tpu_custom_call.1} parent=5 // pred_check
        %p213 = pneg %p212
      $region30: #{tpu_custom_call.1} parent=5 // pred_check_branch
        %215 = sbr.rel (%p213) target = $region32
      $region31: #{tpu_custom_call.1} parent=5 // pred_region
        // Predicated region
        $region33: #{tpu_custom_call.1} parent=31 // pred_check
          %p216 = pneg %p39
        $region34: #{tpu_custom_call.1} parent=31 // pred_check_branch
          %218 = sbr.rel (%p216) target = $region36
        $region35: #{tpu_custom_call.1} parent=31 // pred_region
          %s219 = sand.u32 %s29, 1
          %s220 = scalar_lea.sflag [#allocation3], %s219
          %s221 = sand.u32 %s29, 1
          %s222 = smul.addr %s221, 8
          %s223 = scalar_lea.vmem [#allocation2], %s222
          %s225 = ssub.s32 128, 128
          %226 = vsyncadd %s220, %s225
          %s227 = smul.addr %s19, 128
          %s228 = scalar_lea.hbm %s0, %s227
          %s230 = sshll.u32 %s223, 4
          %s231 = int_to_ptr.vmem [resolvable:$true] %s230
          %233 = dma.hbm_to_vmem [thread:$0]  %s228, 128, %s231, %s220
        $region36: #{tpu_custom_call.1} parent=31 // pred_fallthru
          _
      $region32: #{tpu_custom_call.1} parent=5 // pred_fallthru
        _
      %p234 = scmp.le.s32.totalorder 1, %s19
      %p235 = scmp.lt.s32.totalorder %s19, 5
      %p236 = pnand %p234, %p235
      %p237 = pneg %p236
      // Predicated region
      $region37: #{tpu_custom_call.1} parent=5 // pred_check
        _
      $region38: #{tpu_custom_call.1} parent=5 // pred_check_branch
        %239 = sbr.rel (%p236) target = $region40
      $region39: #{tpu_custom_call.1} parent=5 // pred_region
        %s240 = ssub.s32 %s19, 1
        %s241 = sand.u32 %s32, 1
        %s242 = scalar_lea.sflag [#allocation3], %s241
        %s243 = sand.u32 %s32, 1
        %s244 = smul.addr %s243, 8
        %s245 = scalar_lea.vmem [#allocation2], %s244
        // Predicated region
        $region41: #{tpu_custom_call.1} parent=39 // pred_check
          %p246 = pneg %p45
        $region42: #{tpu_custom_call.1} parent=39 // pred_check_branch
          %248 = sbr.rel (%p246) target = $region44
        $region43: #{tpu_custom_call.1} parent=39 // pred_region
          %249 = dma.done %s242, 128
        $region44: #{tpu_custom_call.1} parent=39 // pred_fallthru
          _
        // Predicated region
        $region45: #{tpu_custom_call.1} parent=39 // pred_check
          %p250 = pneg %p66
        $region46: #{tpu_custom_call.1} parent=39 // pred_check_branch
          %252 = sbr.rel (%p250) target = $region48
        $region47: #{tpu_custom_call.1} parent=39 // pred_region
          %253 = dma.done [#allocation6], 512
        $region48: #{tpu_custom_call.1} parent=39 // pred_fallthru
          _
        // Predicated region
        $region49: #{tpu_custom_call.1} parent=39 // pred_check
          %p254 = pneg %p87
        $region50: #{tpu_custom_call.1} parent=39 // pred_check_branch
          %256 = sbr.rel (%p254) target = $region52
        $region51: #{tpu_custom_call.1} parent=39 // pred_region
          %257 = dma.done [#allocation6], 2048
        $region52: #{tpu_custom_call.1} parent=39 // pred_fallthru
          _
        // Predicated region
        $region53: #{tpu_custom_call.1} parent=39 // pred_check
          %p258 = pneg %p108
        $region54: #{tpu_custom_call.1} parent=39 // pred_check_branch
          %260 = sbr.rel (%p258) target = $region56
        $region55: #{tpu_custom_call.1} parent=39 // pred_region
          %261 = dma.done [#allocation9], 1024
        $region56: #{tpu_custom_call.1} parent=39 // pred_fallthru
          _
        %s262 = sand.u32 %s32, 1
        %s263 = scalar_lea.sflag [#allocation3], %s262
        %s264 = sand.u32 %s32, 1
        %s265 = smul.addr %s264, 8
        %s266 = scalar_lea.vmem [#allocation2], %s265
        %p267 = pneg %p45
        %p268 = pneg %p42
        %p269 = pneg %p66
        %p270 = pneg %p63
        %p271 = pneg %p87
        %p272 = pneg %p84
        %p273 = pneg %p108
        %p274 = pneg %p105
        %p275 = pneg %p129
        %p276 = pneg %p126
        %p277 = pneg %p155
        %p278 = pneg %p152
        %s279 = sand.u32 %s142, 1
        %s280 = scalar_lea.sflag [#allocation4], %s279
        %s281 = sand.u32 %s142, 1
        %s282 = smul.addr %s281, 8
        %s283 = scalar_lea.vmem [#allocation10], %s282
        %v285 = vld [vmem:[%s4] sm:$0x3]
        %v286 = vld [vmem:[%s4 + $0x2] sm:$0x1]
        %v287 = vld [vmem:[%s4 + $0x3] sm:$0x1]
        %v288 = vld [vmem:[%s245] sm:$0xff]
        %v289 = vpack.c.bf16 %v288, %v288
        %v290 = vld [vmem:[#allocation5] sm:$0xff]
        %v291 = vld [vmem:[#allocation5 + $0x8] sm:$0xff]
        %v292 = vld [vmem:[#allocation5 + $0x10] sm:$0xff]
        %v293 = vld [vmem:[#allocation5 + $0x18] sm:$0xff]
        %v295 = vlaneseq
        %v296 = vshrl.u32 %v295, 7
        %v297 = vsub.s32 0, %v296
        %v298 = vrot.slane %v285, %v297
        %v299 = vlaneseq
        %v300 = vshrl.u32 %v299, 7
        %v301 = vsub.s32 1, %v300
        %v302 = vrot.slane %v285, %v301
        %v309 = vunpack.c.l.b16 %v290
        %v310 = vunpack.c.h.b16 %v290
        %v311 = vunpack.c.l.b16 %v291
        %v312 = vunpack.c.h.b16 %v291
        %v313 = vunpack.c.l.b16 %v292
        %v314 = vunpack.c.h.b16 %v292
        %v315 = vunpack.c.l.b16 %v293
        %v316 = vunpack.c.h.b16 %v293
        %v317 = vpack.c.b16 %v311, %v309
        %v318 = vpack.c.b16 %v312, %v310
        %v319 = vpack.c.b16 %v315, %v313
        %v320 = vpack.c.b16 %v316, %v314
        %vm325 = vcmask 261120
        %v327 = vsel %vm325, %v289, 0
        %329 = vmatprep.subr.bf16.mxu0 %v318
        %330 = vmatpush1.bf16.msra.mxu0 %v317
        %331 = vmatprep.subr.bf16.mxu0 %v320
        %332 = vmatpush1.bf16.msra.mxu0 %v319
        %333 = vmatprep.subr.bf16.mxu0 0
        %334 = vmatpush1.bf16.msra.mxu0 0
        %335 = vmatprep.subr.bf16.mxu0 0
        %336 = vmatpush1.bf16.msra.mxu0 0
        %337 = vmatprep.subr.bf16.mxu0 0
        %338 = vmatpush1.bf16.msra.mxu0 0
        %339 = vmatprep.subr.bf16.mxu0 0
        %340 = vmatpush1.bf16.msra.mxu0 0
        %341 = vmatprep.subr.bf16.mxu0 0
        %342 = vmatpush1.bf16.msra.mxu0 0
        %343 = vmatprep.subr.bf16.mxu0 0
        %344 = vmatpush1.bf16.msra.mxu0 0
        %345 = vmatprep.subr.bf16.mxu0 0
        %346 = vmatpush1.bf16.msra.mxu0 0
        %347 = vmatprep.subr.bf16.mxu0 0
        %348 = vmatpush1.bf16.msra.mxu0 0
        %349 = vmatprep.subr.bf16.mxu0 0
        %350 = vmatpush1.bf16.msra.mxu0 0
        %351 = vmatprep.subr.bf16.mxu0 0
        %352 = vmatpush1.bf16.msra.mxu0 0
        %353 = vmatprep.subr.bf16.mxu0 0
        %354 = vmatpush1.bf16.msra.mxu0 0
        %355 = vmatprep.subr.bf16.mxu0 0
        %356 = vmatpush1.bf16.msra.mxu0 0
        %357 = vmatprep.subr.bf16.mxu0 0
        %358 = vmatpush1.bf16.msra.mxu0 0
        %359 = vmatprep.subr.bf16.mxu0 0
        %360 = vmatpush1.bf16.msra.mxu0 0
        %361 = vmatprep.mubr.bf16.mxu0 0
        %362 = vmatmul.mubr.bf16.gmra.mrb[0].mxu0 %v327
        %v363 = vpop.f32.mrb[0].mxu0
        %v364 = vadd.f32 %v298, %v363
        %v365 = vpop.f32.mrb[0].mxu0
        %v366 = vadd.f32 %v302, %v365
        %v367 = vpop.f32.mrb[0].mxu0
        %v368 = vpop.f32.mrb[0].mxu0
        %369 = vdwg.mxu0
        %v370 = vmax.f32 %v364, 0.0
        %v371 = vmax.f32 %v366, 0.0
        %v372 = vrot.slane %v370, 4
        %v373 = vadd.f32 %v370, %v372
        %v374 = vrot.slane %v373, 2
        %v375 = vadd.f32 %v373, %v374
        %v376 = vrot.slane %v375, 1
        %v377 = vadd.f32 %v375, %v376
        %v378 = vrot.slane %v371, 4
        %v379 = vadd.f32 %v371, %v378
        %v380 = vrot.slane %v379, 2
        %v381 = vadd.f32 %v379, %v380
        %v382 = vrot.slane %v381, 1
        %v383 = vadd.f32 %v381, %v382
        %v384 = vrcp.pop 8.0
        %v385 = vmul.f32 %v377, %v384
        %v386 = vmul.f32 %v383, %v384
        %v387 = vsub.f32 %v370, %v385
        %v388 = vsub.f32 %v371, %v386
        %v389 = vmul.f32 %v387, %v387
        %v390 = vmul.f32 %v388, %v388
        %v391 = vrot.slane %v389, 4
        %v392 = vadd.f32 %v389, %v391
        %v393 = vrot.slane %v392, 2
        %v394 = vadd.f32 %v392, %v393
        %v395 = vrot.slane %v394, 1
        %v396 = vadd.f32 %v394, %v395
        %v397 = vrot.slane %v390, 4
        %v398 = vadd.f32 %v390, %v397
        %v399 = vrot.slane %v398, 2
        %v400 = vadd.f32 %v398, %v399
        %v401 = vrot.slane %v400, 1
        %v402 = vadd.f32 %v400, %v401
        %v403 = vmul.f32 %v396, %v384
        %v404 = vmul.f32 %v402, %v384
        %v405 = vadd.f32 %v403, 1e-05
        %v406 = vadd.f32 %v404, 1e-05
        %v407 = vrsqrt.pop %v405
        %v408 = vrsqrt.pop %v406
        %v409 = vmul.f32 %v387, %v407
        %v410 = vmul.f32 %v388, %v408
        %v411 = vpack.c.bf16 %v409, %v409
        %v412 = vpack.c.bf16 %v410, %v410
        %v413 = vld [vmem:[#allocation7] sm:$0xf]
        %v414 = vld [vmem:[#allocation7 + $0x4] sm:$0xf]
        %v415 = vld [vmem:[#allocation7 + $0x8] sm:$0xf]
        %v416 = vld [vmem:[#allocation7 + $0xc] sm:$0xf]
        %v417 = vld [vmem:[#allocation7 + $0x10] sm:$0xf]
        %v418 = vld [vmem:[#allocation7 + $0x14] sm:$0xf]
        %v419 = vld [vmem:[#allocation7 + $0x18] sm:$0xf]
        %v420 = vld [vmem:[#allocation7 + $0x1c] sm:$0xf]
        %v421 = vld [vmem:[#allocation7 + $0x20] sm:$0xf]
        %v422 = vld [vmem:[#allocation7 + $0x24] sm:$0xf]
        %v423 = vld [vmem:[#allocation7 + $0x28] sm:$0xf]
        %v424 = vld [vmem:[#allocation7 + $0x2c] sm:$0xf]
        %v425 = vld [vmem:[#allocation7 + $0x30] sm:$0xf]
        %v426 = vld [vmem:[#allocation7 + $0x34] sm:$0xf]
        %v427 = vld [vmem:[#allocation7 + $0x38] sm:$0xf]
        %v428 = vld [vmem:[#allocation7 + $0x3c] sm:$0xf]
        %v429 = vld [vmem:[#allocation7 + $0x40] sm:$0xf]
        %v430 = vld [vmem:[#allocation7 + $0x44] sm:$0xf]
        %v431 = vld [vmem:[#allocation7 + $0x48] sm:$0xf]
        %v432 = vld [vmem:[#allocation7 + $0x4c] sm:$0xf]
        %v433 = vld [vmem:[#allocation7 + $0x50] sm:$0xf]
        %v434 = vld [vmem:[#allocation7 + $0x54] sm:$0xf]
        %v435 = vld [vmem:[#allocation7 + $0x58] sm:$0xf]
        %v436 = vld [vmem:[#allocation7 + $0x5c] sm:$0xf]
        %v437 = vld [vmem:[#allocation7 + $0x60] sm:$0xf]
        %v438 = vld [vmem:[#allocation7 + $0x64] sm:$0xf]
        %v439 = vld [vmem:[#allocation7 + $0x68] sm:$0xf]
        %v440 = vld [vmem:[#allocation7 + $0x6c] sm:$0xf]
        %v441 = vld [vmem:[#allocation7 + $0x70] sm:$0xf]
        %v442 = vld [vmem:[#allocation7 + $0x74] sm:$0xf]
        %v443 = vld [vmem:[#allocation7 + $0x78] sm:$0xf]
        %v444 = vld [vmem:[#allocation7 + $0x7c] sm:$0xf]
        %v446 = vlaneseq
        %v447 = vshrl.u32 %v446, 7
        %v448 = vsub.s32 0, %v447
        %v449 = vrot.slane %v286, %v448
        %v483 = vunpack.c.l.b16 %v413
        %v484 = vunpack.c.l.b16 %v414
        %v485 = vunpack.c.l.b16 %v415
        %v486 = vunpack.c.l.b16 %v416
        %v487 = vunpack.c.l.b16 %v417
        %v488 = vunpack.c.l.b16 %v418
        %v489 = vunpack.c.l.b16 %v419
        %v490 = vunpack.c.l.b16 %v420
        %v491 = vunpack.c.l.b16 %v421
        %v492 = vunpack.c.l.b16 %v422
        %v493 = vunpack.c.l.b16 %v423
        %v494 = vunpack.c.l.b16 %v424
        %v495 = vunpack.c.l.b16 %v425
        %v496 = vunpack.c.l.b16 %v426
        %v497 = vunpack.c.l.b16 %v427
        %v498 = vunpack.c.l.b16 %v428
        %v499 = vunpack.c.l.b16 %v429
        %v500 = vunpack.c.l.b16 %v430
        %v501 = vunpack.c.l.b16 %v431
        %v502 = vunpack.c.l.b16 %v432
        %v503 = vunpack.c.l.b16 %v433
        %v504 = vunpack.c.l.b16 %v434
        %v505 = vunpack.c.l.b16 %v435
        %v506 = vunpack.c.l.b16 %v436
        %v507 = vunpack.c.l.b16 %v437
        %v508 = vunpack.c.l.b16 %v438
        %v509 = vunpack.c.l.b16 %v439
        %v510 = vunpack.c.l.b16 %v440
        %v511 = vunpack.c.l.b16 %v441
        %v512 = vunpack.c.l.b16 %v442
        %v513 = vunpack.c.l.b16 %v443
        %v514 = vunpack.c.l.b16 %v444
        %v515 = vpack.c.b16 %v484, %v483
        %v516 = vpack.c.b16 %v486, %v485
        %v517 = vpack.c.b16 %v488, %v487
        %v518 = vpack.c.b16 %v490, %v489
        %v519 = vpack.c.b16 %v492, %v491
        %v520 = vpack.c.b16 %v494, %v493
        %v521 = vpack.c.b16 %v496, %v495
        %v522 = vpack.c.b16 %v498, %v497
        %v523 = vpack.c.b16 %v500, %v499
        %v524 = vpack.c.b16 %v502, %v501
        %v525 = vpack.c.b16 %v504, %v503
        %v526 = vpack.c.b16 %v506, %v505
        %v527 = vpack.c.b16 %v508, %v507
        %v528 = vpack.c.b16 %v510, %v509
        %v529 = vpack.c.b16 %v512, %v511
        %v530 = vpack.c.b16 %v514, %v513
        %547 = vmatprep.subr.bf16.mxu0 0
        %548 = vmatpush1.bf16.msra.mxu0 %v515
        %549 = vmatprep.subr.bf16.mxu0 0
        %550 = vmatpush1.bf16.msra.mxu0 %v516
        %551 = vmatprep.subr.bf16.mxu0 0
        %552 = vmatpush1.bf16.msra.mxu0 %v517
        %553 = vmatprep.subr.bf16.mxu0 0
        %554 = vmatpush1.bf16.msra.mxu0 %v518
        %555 = vmatprep.subr.bf16.mxu0 0
        %556 = vmatpush1.bf16.msra.mxu0 %v519
        %557 = vmatprep.subr.bf16.mxu0 0
        %558 = vmatpush1.bf16.msra.mxu0 %v520
        %559 = vmatprep.subr.bf16.mxu0 0
        %560 = vmatpush1.bf16.msra.mxu0 %v521
        %561 = vmatprep.subr.bf16.mxu0 0
        %562 = vmatpush1.bf16.msra.mxu0 %v522
        %563 = vmatprep.subr.bf16.mxu0 0
        %564 = vmatpush1.bf16.msra.mxu0 %v523
        %565 = vmatprep.subr.bf16.mxu0 0
        %566 = vmatpush1.bf16.msra.mxu0 %v524
        %567 = vmatprep.subr.bf16.mxu0 0
        %568 = vmatpush1.bf16.msra.mxu0 %v525
        %569 = vmatprep.subr.bf16.mxu0 0
        %570 = vmatpush1.bf16.msra.mxu0 %v526
        %571 = vmatprep.subr.bf16.mxu0 0
        %572 = vmatpush1.bf16.msra.mxu0 %v527
        %573 = vmatprep.subr.bf16.mxu0 0
        %574 = vmatpush1.bf16.msra.mxu0 %v528
        %575 = vmatprep.subr.bf16.mxu0 0
        %576 = vmatpush1.bf16.msra.mxu0 %v529
        %577 = vmatprep.subr.bf16.mxu0 0
        %578 = vmatpush1.bf16.msra.mxu0 %v530
        %579 = vmatprep.mubr.bf16.mxu0 %v412
        %580 = vmatmul.mubr.bf16.gmra.mrb[0].mxu0 %v411
        %v581 = vpop.f32.mrb[0].mxu0
        %v582 = vadd.f32 %v449, %v581
        %v583 = vpop.f32.mrb[0].mxu0
        %v584 = vpop.f32.mrb[0].mxu0
        %v585 = vpop.f32.mrb[0].mxu0
        %586 = vdwg.mxu0
        %v587 = vmax.f32 %v582, 0.0
        %v588 = vpack.c.bf16 %v587, %v587
        %v589 = vld [vmem:[#allocation8] sm:$0xf]
        %v590 = vld [vmem:[#allocation8 + $0x4] sm:$0xf]
        %v591 = vld [vmem:[#allocation8 + $0x8] sm:$0xf]
        %v592 = vld [vmem:[#allocation8 + $0xc] sm:$0xf]
        %v593 = vld [vmem:[#allocation8 + $0x10] sm:$0xf]
        %v594 = vld [vmem:[#allocation8 + $0x14] sm:$0xf]
        %v595 = vld [vmem:[#allocation8 + $0x18] sm:$0xf]
        %v596 = vld [vmem:[#allocation8 + $0x1c] sm:$0xf]
        %v597 = vld [vmem:[#allocation8 + $0x20] sm:$0xf]
        %v598 = vld [vmem:[#allocation8 + $0x24] sm:$0xf]
        %v599 = vld [vmem:[#allocation8 + $0x28] sm:$0xf]
        %v600 = vld [vmem:[#allocation8 + $0x2c] sm:$0xf]
        %v601 = vld [vmem:[#allocation8 + $0x30] sm:$0xf]
        %v602 = vld [vmem:[#allocation8 + $0x34] sm:$0xf]
        %v603 = vld [vmem:[#allocation8 + $0x38] sm:$0xf]
        %v604 = vld [vmem:[#allocation8 + $0x3c] sm:$0xf]
        %v606 = vlaneseq
        %v607 = vshrl.u32 %v606, 7
        %v608 = vsub.s32 0, %v607
        %v609 = vrot.slane %v287, %v608
        %v627 = vunpack.c.l.b16 %v589
        %v628 = vunpack.c.l.b16 %v590
        %v629 = vunpack.c.l.b16 %v591
        %v630 = vunpack.c.l.b16 %v592
        %v631 = vunpack.c.l.b16 %v593
        %v632 = vunpack.c.l.b16 %v594
        %v633 = vunpack.c.l.b16 %v595
        %v634 = vunpack.c.l.b16 %v596
        %v635 = vunpack.c.l.b16 %v597
        %v636 = vunpack.c.l.b16 %v598
        %v637 = vunpack.c.l.b16 %v599
        %v638 = vunpack.c.l.b16 %v600
        %v639 = vunpack.c.l.b16 %v601
        %v640 = vunpack.c.l.b16 %v602
        %v641 = vunpack.c.l.b16 %v603
        %v642 = vunpack.c.l.b16 %v604
        %v643 = vpack.c.b16 %v628, %v627
        %v644 = vpack.c.b16 %v630, %v629
        %v645 = vpack.c.b16 %v632, %v631
        %v646 = vpack.c.b16 %v634, %v633
        %v647 = vpack.c.b16 %v636, %v635
        %v648 = vpack.c.b16 %v638, %v637
        %v649 = vpack.c.b16 %v640, %v639
        %v650 = vpack.c.b16 %v642, %v641
        %659 = vmatprep.subr.bf16.mxu0 0
        %660 = vmatpush1.bf16.msra.mxu0 %v643
        %661 = vmatprep.subr.bf16.mxu0 0
        %662 = vmatpush1.bf16.msra.mxu0 %v644
        %663 = vmatprep.subr.bf16.mxu0 0
        %664 = vmatpush1.bf16.msra.mxu0 %v645
        %665 = vmatprep.subr.bf16.mxu0 0
        %666 = vmatpush1.bf16.msra.mxu0 %v646
        %667 = vmatprep.subr.bf16.mxu0 0
        %668 = vmatpush1.bf16.msra.mxu0 %v647
        %669 = vmatprep.subr.bf16.mxu0 0
        %670 = vmatpush1.bf16.msra.mxu0 %v648
        %671 = vmatprep.subr.bf16.mxu0 0
        %672 = vmatpush1.bf16.msra.mxu0 %v649
        %673 = vmatprep.subr.bf16.mxu0 0
        %674 = vmatpush1.bf16.msra.mxu0 %v650
        %675 = vmatprep.subr.bf16.mxu0 0
        %676 = vmatpush1.bf16.msra.mxu0 0
        %677 = vmatprep.subr.bf16.mxu0 0
        %678 = vmatpush1.bf16.msra.mxu0 0
        %679 = vmatprep.subr.bf16.mxu0 0
        %680 = vmatpush1.bf16.msra.mxu0 0
        %681 = vmatprep.subr.bf16.mxu0 0
        %682 = vmatpush1.bf16.msra.mxu0 0
        %683 = vmatprep.subr.bf16.mxu0 0
        %684 = vmatpush1.bf16.msra.mxu0 0
        %685 = vmatprep.subr.bf16.mxu0 0
        %686 = vmatpush1.bf16.msra.mxu0 0
        %687 = vmatprep.subr.bf16.mxu0 0
        %688 = vmatpush1.bf16.msra.mxu0 0
        %689 = vmatprep.subr.bf16.mxu0 0
        %690 = vmatpush1.bf16.msra.mxu0 0
        %691 = vmatprep.mubr.bf16.mxu0 0
        %692 = vmatmul.mubr.bf16.gmra.mrb[0].mxu0 %v588
        %v693 = vpop.f32.mrb[0].mxu0
        %v694 = vadd.f32 %v609, %v693
        %v695 = vpop.f32.mrb[0].mxu0
        %v696 = vpop.f32.mrb[0].mxu0
        %v697 = vpop.f32.mrb[0].mxu0
        %698 = vdwg.mxu0
        %699 = vst [vmem:[%s283] sm:$0xff] %v694
        %s700 = sand.u32 %s142, 1
        %s701 = scalar_lea.sflag [#allocation4], %s700
        %s702 = sand.u32 %s142, 1
        %s703 = smul.addr %s702, 8
        %s704 = scalar_lea.vmem [#allocation10], %s703
        // Predicated region
        $region57: #{tpu_custom_call.1} parent=39 // pred_check
          %p705 = pneg %p152
        $region58: #{tpu_custom_call.1} parent=39 // pred_check_branch
          %707 = sbr.rel (%p705) target = $region60
        $region59: #{tpu_custom_call.1} parent=39 // pred_region
          %s709 = ssub.s32 128, 128
          %710 = vsyncadd %s701, %s709
          %s711 = smul.addr %s24, 128
          %s712 = scalar_lea.hbm %s5, %s711
          %s714 = sshll.u32 %s704, 4
          %s715 = int_to_ptr.vmem [resolvable:$true] %s714
          %717 = dma.vmem_to_hbm [thread:$0]  %s715, 128, %s712, %s701
        $region60: #{tpu_custom_call.1} parent=39 // pred_fallthru
          _
      $region40: #{tpu_custom_call.1} parent=5 // pred_fallthru
        _
      %p718 = scmp.le.s32.totalorder 2, %s19
      // Predicated region
      $region61: #{tpu_custom_call.1} parent=5 // pred_check
        %p719 = pneg %p718
      $region62: #{tpu_custom_call.1} parent=5 // pred_check_branch
        %721 = sbr.rel (%p719) target = $region64
      $region63: #{tpu_custom_call.1} parent=5 // pred_region
        %s722 = ssub.s32 %s19, 2
        // Predicated region
        $region65: #{tpu_custom_call.1} parent=63 // pred_check
          %p723 = pneg %p158
        $region66: #{tpu_custom_call.1} parent=63 // pred_check_branch
          %725 = sbr.rel (%p723) target = $region68
        $region67: #{tpu_custom_call.1} parent=63 // pred_region
          %s726 = sand.u32 %s143, 1
          %s727 = scalar_lea.sflag [#allocation4], %s726
          %s728 = sand.u32 %s143, 1
          %s729 = smul.addr %s728, 8
          %s730 = scalar_lea.vmem [#allocation10], %s729
          %731 = dma.done %s727, 128
        $region68: #{tpu_custom_call.1} parent=63 // pred_fallthru
          _
      $region64: #{tpu_custom_call.1} parent=5 // pred_fallthru
        _
    $region6: #{tpu_custom_call.1} parent=1 // loop_footer
      %s23 = sadd.s32 1, %s19
    $region7: #{tpu_custom_call.1} parent=1 // loop_footer_branch
      %18 = sbr.rel target = $region3
    $region8: #{tpu_custom_call.1} parent=1 // loop_exit
      _
    %732 = vsyncpa [#allocation3], 1
    %s733 = scalar_lea.sflag [#allocation3], 1
    %734 = vsyncpa %s733, 1
    %735 = vsyncpa [#allocation6], 1
    %736 = vsyncpa [#allocation9], 1
    %737 = vsyncpa [#allocation4], 1
    %s738 = scalar_lea.sflag [#allocation4], 1
    %739 = vsyncpa %s738, 1

</llo_original>
